<compile_context>
chip_gen: v6e
topology: v6e:2x2x1
jax: 0.10.0
libtpu: 0.0.40
codegen_flags: <defaults>
</compile_context>

<pallas_src>
import functools

import jax
import jax.numpy as jnp
from jax import lax
from jax.experimental import pallas as pl
from jax.experimental.pallas import tpu as pltpu


# ----------------------------- helpers ------------------------------------ #

def _round_up(x, m):
    return ((x + m - 1) // m) * m


def _cdiv(a, b):
    return -(-a // b)


def _sublane(itemsize):
    # Min second-minor layout tile: 8 (f32), 16 (bf16), 32 (int8/fp8).
    return max(8, 32 // int(itemsize))


# Total VMEM we aim to occupy (double-buffered tiles + resident buffers).
# Chosen to fit comfortably inside v7x's 64 MiB physical VMEM.
_TOTAL_VMEM_BUDGET = 40 * 1024 * 1024

# Set to lax.Precision.HIGHEST for bit-faithful f32 Gram (≈3x MXU cost;
# irrelevant when mem-bound, default matches prior validated numerics).
_DOT_PRECISION = None


def _choose_tk(ab, k, itemsize, resident_bytes):
    """Pick a K tile.

    * tk is a multiple of 128, or tk == k (a full-dim block is always legal),
    * 2 * feature-tile bytes + resident_bytes <= _TOTAL_VMEM_BUDGET,
    * tiles are balanced so the masked tail is < 128 columns.
    Returns (tk, num_k_tiles).
    """
    tile_budget = max(512 * 1024, (_TOTAL_VMEM_BUDGET - resident_bytes) // 2)
    bytes_per_col = max(1, _round_up(ab, _sublane(itemsize)) * itemsize)
    tk_max = max(128, (tile_budget // bytes_per_col) // 128 * 128)
    if tk_max >= k:
        return k, 1                       # single step; block spans all of K
    nk = _cdiv(k, tk_max)                 # fewest tiles that fit the budget
    tk = _round_up(_cdiv(k, nk), 128)     # balanced -> tail waste < 128 cols
    return tk, _cdiv(k, tk)


def _vmem_limit(tile_bytes, resident_bytes):
    est = 2 * tile_bytes + resident_bytes + (8 << 20)   # margin for internals
    return int(min(max(est, 48 << 20), 128 << 20))


# ----------------------------- kernels ------------------------------------ #

def _gram_kernel(feat_ref, g_ref, *, inv_norm, tk, k_total, need_mask):
    """Accumulate G = sum_k F[:, k-tile] @ F[:, k-tile].T directly into the
    resident f32 output block; scale in place at the last step."""
    kstep = pl.program_id(0)

    @pl.when(kstep == 0)
    def _():
        g_ref[...] = jnp.zeros_like(g_ref)

    f = feat_ref[...]
    if need_mask:
        # Last K block extends past the real K; the out-of-bounds columns of
        # the VMEM tile are unspecified -> zero them before the dot.
        col = kstep * tk + lax.broadcasted_iota(jnp.int32, f.shape, 1)
        f = jnp.where(col < k_total, f, jnp.zeros_like(f))

    # Contract the last dim of both operands (F @ F.T without materializing
    # a transpose).  TODO(synk): confirm via bundle dump that Mosaic does not
    # emit a per-tile vxpose here; if it does, switch to pl.dot(trans_b=True).
    g_ref[...] += lax.dot_general(
        f, f,
        dimension_numbers=(((1,), (1,)), ((), ())),
        preferred_element_type=jnp.float32,
        precision=_DOT_PRECISION,
    )

    @pl.when(kstep == pl.num_programs(0) - 1)
    def _():
        g_ref[...] = g_ref[...] * inv_norm


def _style_loss_kernel(feat_ref, target_hbm, loss_ref, acc_ref, tgt_vmem,
                       tgt_sem, *, inv_norm, inv_count, tk, k_total,
                       need_mask, target_fetch_step):
    """Gram of x (VMEM scratch only) + MSE against the target Gram, which is
    prefetched from HBM just before the final step."""
    kstep = pl.program_id(0)

    @pl.when(kstep == 0)
    def _():
        acc_ref[...] = jnp.zeros_like(acc_ref)

    # Launch the target-Gram DMA late: it is only consumed at the last step,
    # so it never occupies VMEM during the bulk of the K loop and its transfer
    # hides behind the final matmul(s).
    @pl.when(kstep == target_fetch_step)
    def _():
        pltpu.make_async_copy(target_hbm, tgt_vmem, tgt_sem).start()

    f = feat_ref[...]
    if need_mask:
        col = kstep * tk + lax.broadcasted_iota(jnp.int32, f.shape, 1)
        f = jnp.where(col < k_total, f, jnp.zeros_like(f))

    acc_ref[...] += lax.dot_general(
        f, f,
        dimension_numbers=(((1,), (1,)), ((), ())),
        preferred_element_type=jnp.float32,
        precision=_DOT_PRECISION,
    )

    @pl.when(kstep == pl.num_programs(0) - 1)
    def _():
        pltpu.make_async_copy(target_hbm, tgt_vmem, tgt_sem).wait()
        g = acc_ref[...] * inv_norm
        diff = g - tgt_vmem[...]
        # Exact (ab, ab) buffers -> plain mean over the real element count.
        loss_ref[0, 0] = jnp.sum(diff * diff) * inv_count


# ----------------------------- wrappers ------------------------------------ #

def gram_matrix(x):
    """G = F @ F.T / (a*b*c*d), F = x.reshape(a*b, c*d). Exact-shape output."""
    a, b, c, d = x.shape
    ab, k = a * b, c * d
    feats = x.reshape(ab, k)              # metadata-only reshape; no HBM pass
    itemsize = jnp.dtype(x.dtype).itemsize
    gram_bytes = _round_up(ab, 8) * _round_up(ab, 128) * 4
    tk, nk = _choose_tk(ab, k, itemsize, resident_bytes=2 * gram_bytes)
    need_mask = (k % tk) != 0
    inv_norm = 1.0 / float(a * b * c * d)
    tile_bytes = _round_up(ab, _sublane(itemsize)) * _round_up(tk, 128) * itemsize

    return pl.pallas_call(
        functools.partial(_gram_kernel, inv_norm=inv_norm, tk=tk,
                          k_total=k, need_mask=need_mask),
        out_shape=jax.ShapeDtypeStruct((ab, ab), jnp.float32),
        grid=(nk,),
        in_specs=[pl.BlockSpec((ab, tk), lambda kidx: (0, kidx))],
        out_specs=pl.BlockSpec((ab, ab), lambda kidx: (0, 0)),
        compiler_params=pltpu.CompilerParams(
            dimension_semantics=("arbitrary",),
            vmem_limit_bytes=_vmem_limit(tile_bytes, 2 * gram_bytes)),
        cost_estimate=pl.CostEstimate(
            flops=2 * ab * ab * k,
            transcendentals=0,
            bytes_accessed=ab * k * itemsize + ab * ab * 4),
    )(feats)


def style_loss_forward(x, target_gram):
    a, b, c, d = x.shape
    ab, k = a * b, c * d
    assert target_gram.shape == (ab, ab) and target_gram.dtype == jnp.float32
    feats = x.reshape(ab, k)
    itemsize = jnp.dtype(x.dtype).itemsize
    gram_bytes = _round_up(ab, 8) * _round_up(ab, 128) * 4
    resident = 2 * gram_bytes             # acc scratch + target landing buffer
    tk, nk = _choose_tk(ab, k, itemsize, resident_bytes=resident)
    need_mask = (k % tk) != 0
    inv_norm = 1.0 / float(a * b * c * d)
    inv_count = 1.0 / float(ab * ab)
    tile_bytes = _round_up(ab, _sublane(itemsize)) * _round_up(tk, 128) * itemsize
    target_fetch_step = max(nk - 2, 0)

    loss = pl.pallas_call(
        functools.partial(_style_loss_kernel,
                          inv_norm=inv_norm, inv_count=inv_count, tk=tk,
                          k_total=k, need_mask=need_mask,
                          target_fetch_step=target_fetch_step),
        out_shape=jax.ShapeDtypeStruct((1, 1), jnp.float32),
        grid=(nk,),
        in_specs=[
            pl.BlockSpec((ab, tk), lambda kidx: (0, kidx)),
            pl.BlockSpec(memory_space=pl.ANY),     # target stays in HBM
        ],
        out_specs=pl.BlockSpec((1, 1), lambda kidx: (0, 0),
                               memory_space=pltpu.MemorySpace.SMEM),
        scratch_shapes=[
            pltpu.VMEM((ab, ab), jnp.float32),     # Gram accumulator
            pltpu.VMEM((ab, ab), jnp.float32),     # target landing buffer
            pltpu.SemaphoreType.DMA(()),
        ],
        compiler_params=pltpu.CompilerParams(
            dimension_semantics=("arbitrary",),
            vmem_limit_bytes=_vmem_limit(tile_bytes, resident)),
        cost_estimate=pl.CostEstimate(
            flops=2 * ab * ab * k,
            transcendentals=0,
            bytes_accessed=ab * k * itemsize + 2 * ab * ab * 4),
    )(feats, target_gram)
    # forward() returns its input unchanged; loss is a side output.
    return x, loss[0, 0]


class StyleLoss:
    """JAX/Pallas port of the PyTorch StyleLoss module."""

    def __init__(self, target_features):
        # Matches PyTorch: target Gram is computed once ("detached").
        self.target = gram_matrix(target_features)
        self._target_f32 = self.target.astype(jnp.float32)
        self.loss = None
        # TODO(synk): on v7x, add a 'parallel' row-block grid axis to split the
        # Gram across the two TensorCores when AB is large enough to be
        # MXU-bound; mem-bound shapes should not duplicate feature reads.

    def __call__(self, x):
        x_out, self.loss = style_loss_forward(x, self._target_f32)
        return x_out


# ------------------------------- main -------------------------------------- #

if __name__ == "__main__":
    key = jax.random.PRNGKey(0)
    k_tgt, k_x = jax.random.split(key)

    a, b, c, d = 2, 4, 16, 16  # NCHW, small synthetic shapes
    target_features = jax.random.normal(k_tgt, (a, b, c, d), dtype=jnp.float32)
    x = jax.random.normal(k_x, (a, b, c, d), dtype=jnp.float32)

    module = StyleLoss(target_features)
    y = module(x)
    y = jax.block_until_ready(y)
    loss = jax.block_until_ready(module.loss)

    # Pure-JAX reference check.
    def ref_gram(inp):
        feats = inp.reshape(a * b, c * d)
        return (feats @ feats.T) / (a * b * c * d)

    g_ref_t = ref_gram(target_features)
    g_ref_x = ref_gram(x)
    loss_ref = jnp.mean((g_ref_x - g_ref_t) ** 2)

    assert y.shape == x.shape and jnp.allclose(y, x), "forward must return x"
    assert jnp.allclose(module.target, g_ref_t, rtol=1e-5, atol=1e-5)
    assert jnp.allclose(loss, loss_ref, rtol=1e-5, atol=1e-6), (loss, loss_ref)

    print("KERNEL_OK")
</pallas_src>

<mosaic_0001>
module attributes {stable_mosaic.version = 11 : i64} {
  func.func @_gram_kernel(%arg0: i32, %arg1: memref<8x256xf32, #tpu.memory_space<vmem>>, %arg2: memref<8x8xf32, #tpu.memory_space<vmem>>) attributes {dimension_semantics = [#tpu.dimension_semantics<arbitrary>], iteration_bounds = array<i64: 1>, scalar_prefetch = 0 : i64, scratch_operands = 0 : i64, tpu.core_type = #tpu.core_type<tc>, window_params = [{transform_indices = @transform_0, window_bounds = array<i64: 8, 256>}, {pipeline_mode = #tpu.pipeline_mode<synchronous>, transform_indices = @transform_1, window_bounds = array<i64: 8, 8>}]} {
    %c0_i32 = arith.constant 0 : i32
    %0 = arith.cmpi eq, %arg0, %c0_i32 : i32
    %1 = arith.extui %0 : i1 to i32
    %c0_i32_0 = arith.constant 0 : i32
    %2 = arith.cmpi ne, %1, %c0_i32_0 : i32
    scf.if %2 {
      %cst_8 = arith.constant 0.000000e+00 : f32
      %11 = vector.broadcast %cst_8 : f32 to vector<8x8xf32>
      %c0_9 = arith.constant 0 : index
      %c0_10 = arith.constant 0 : index
      %12 = vector.load %arg2[%c0_9, %c0_10] : memref<8x8xf32, #tpu.memory_space<vmem>>, vector<8x8xf32>
      tpu.vector_store %arg2[%c0_9, %c0_10], %11 {strides = array<i32>} : memref<8x8xf32, #tpu.memory_space<vmem>>, vector<8x8xf32>,
    } else {
    }
    %c0 = arith.constant 0 : index
    %c0_1 = arith.constant 0 : index
    %3 = vector.load %arg1[%c0, %c0_1] : memref<8x256xf32, #tpu.memory_space<vmem>>, vector<8x256xf32>
    %c0_2 = arith.constant 0 : index
    %c0_3 = arith.constant 0 : index
    %4 = vector.load %arg2[%c0_2, %c0_3] : memref<8x8xf32, #tpu.memory_space<vmem>>, vector<8x8xf32>
    %cst = arith.constant dense<0.000000e+00> : vector<8x8xf32>
    %5 = tpu.matmul %3, %3, %cst {dimension_numbers = #tpu.dot_dimension_numbers<[1], [1], [0], [0], [0, 0, 1, 0], [], []>} : vector<8x256xf32>, vector<8x256xf32>, vector<8x8xf32> -> vector<8x8xf32>
    %6 = arith.addf %4, %5 : vector<8x8xf32>
    %c0_4 = arith.constant 0 : index
    %c0_5 = arith.constant 0 : index
    %7 = vector.load %arg2[%c0_4, %c0_5] : memref<8x8xf32, #tpu.memory_space<vmem>>, vector<8x8xf32>
    tpu.vector_store %arg2[%c0_4, %c0_5], %6 {strides = array<i32>} : memref<8x8xf32, #tpu.memory_space<vmem>>, vector<8x8xf32>,
    %c0_i32_6 = arith.constant 0 : i32
    %8 = arith.cmpi eq, %arg0, %c0_i32_6 : i32
    %9 = arith.extui %8 : i1 to i32
    %c0_i32_7 = arith.constant 0 : i32
    %10 = arith.cmpi ne, %9, %c0_i32_7 : i32
    scf.if %10 {
      %c0_8 = arith.constant 0 : index
      %c0_9 = arith.constant 0 : index
      %11 = vector.load %arg2[%c0_8, %c0_9] : memref<8x8xf32, #tpu.memory_space<vmem>>, vector<8x8xf32>
      %cst_10 = arith.constant 4.8828125E-4 : f32
      %12 = vector.broadcast %cst_10 : f32 to vector<8x8xf32>
      %13 = arith.mulf %11, %12 : vector<8x8xf32>
      %c0_11 = arith.constant 0 : index
      %c0_12 = arith.constant 0 : index
      %14 = vector.load %arg2[%c0_11, %c0_12] : memref<8x8xf32, #tpu.memory_space<vmem>>, vector<8x8xf32>
      tpu.vector_store %arg2[%c0_11, %c0_12], %13 {strides = array<i32>} : memref<8x8xf32, #tpu.memory_space<vmem>>, vector<8x8xf32>,
    } else {
    }
    return
  }
  func.func @transform_0(%arg0: i32) -> (i32, i32) {
    %c0_i32 = arith.constant 0 : i32
    %c0_i32_0 = arith.constant 0 : i32
    return %c0_i32, %arg0 : i32, i32
  }
  func.func @transform_1(%arg0: i32) -> (i32, i32) {
    %c0_i32 = arith.constant 0 : i32
    %c0_i32_0 = arith.constant 0 : i32
    %c0_i32_1 = arith.constant 0 : i32
    return %c0_i32, %c0_i32_0 : i32, i32
  }
}

</mosaic_0001>

<llo_original>
// kernel: tpu_custom_call.1
$region0: #{tpu_custom_call.1}
  #allocation0 [shape = 'u32[]', space=smem, size = 0x4, offset = 0x4, fixed_abs, tag = 'smem constant byte address 0x4 - core index']
  #allocation1 [shape = 'u32[144,128]{1,0:T(1,128)}', space=vmem, size = 0x12000, scoped, tag = 'internal scratch']
  %s0 = inlined_call_operand.hbm [shape: f32[8,256], index: 0, kind: input, shape index: {}]
  %s1 = inlined_call_operand.hbm [shape: f32[8,8], index: 1, kind: output, shape index: {}]
  %s2 = sld [smem:[#allocation0]]
  $region26: #{tpu_custom_call.1} parent=0
    _
  %s4 = ssub.s32 1, %s2
  %s5 = scalar_select 0, %s4, %s2
  $region1: #{tpu_custom_call.1} parent=0
    #allocation2 [shape = 'u8[8192]{0}', space=vmem, size = 0x2000, scoped, tag = 'input window, operand 0, single buffered']
    #allocation3 [shape = 's32[1]{0}', space=sflag, size = 0x4, scoped, tag = 'scoped memory for tpu_custom_call.1']
    #allocation4 [shape = 's32[1]{0}', space=sflag, size = 0x4, scoped, tag = 'scoped memory for tpu_custom_call.1']
    #allocation5 [shape = 'u8[4096]{0}', space=vmem, size = 0x1000, scoped, tag = 'output window, operand 0, single buffered']
    %6 = vsyncpa [#allocation3], 0
    %7 = vsyncpa [#allocation4], 0
    // Predicated region
    $region2: #{tpu_custom_call.1} parent=1 // pred_check
      _
    $region3: #{tpu_custom_call.1} parent=1 // pred_check_branch
      %9 = sbr.rel (0) target = $region5
    $region4: #{tpu_custom_call.1} parent=1 // pred_region
      %s11 = ssub.s32 256, 256
      %12 = vsyncadd [#allocation3], %s11
      %s14 = sshll.u32 [#allocation2], 4
      %s15 = int_to_ptr.vmem [resolvable:$true] %s14
      %17 = dma.hbm_to_vmem [thread:$0]  %s0, 256, %s15, [#allocation3]
    $region5: #{tpu_custom_call.1} parent=1 // pred_fallthru
      _
    // Predicated region
    $region6: #{tpu_custom_call.1} parent=1 // pred_check
      _
    $region7: #{tpu_custom_call.1} parent=1 // pred_check_branch
      %19 = sbr.rel (0) target = $region9
    $region8: #{tpu_custom_call.1} parent=1 // pred_region
      %20 = dma.done [#allocation3], 256
    $region9: #{tpu_custom_call.1} parent=1 // pred_fallthru
      _
    %p21 = scmp.eq.s32.totalorder 0, 0
    // Predicated region
    $region10: #{tpu_custom_call.1} parent=1 // pred_check
      %p22 = pneg %p21
    $region11: #{tpu_custom_call.1} parent=1 // pred_check_branch
      %24 = sbr.rel (%p22) target = $region13
    $region12: #{tpu_custom_call.1} parent=1 // pred_region
      %vm25 = vcmask 64512
      %26 = vst.msk [vmem:[#allocation5] sm:$0xff] %vm25, 0.0
    $region13: #{tpu_custom_call.1} parent=1 // pred_fallthru
      _
    %v27 = vld [vmem:[#allocation2] sm:$0xff]
    %v28 = vld [vmem:[#allocation2 + $0x8] sm:$0xff]
    %v29 = vld [vmem:[#allocation5] sm:$0xff]
    %30 = vmatprep.subr.mxu0 0.0
    %31 = vmatpush1.xpose.msra.mxu0 0.0
    %32 = vmatprep.subr.mxu0 0.0
    %33 = vmatpush1.xpose.msra.mxu0 0.0
    %34 = vmatprep.subr.mxu0 0.0
    %35 = vmatpush1.xpose.msra.mxu0 0.0
    %36 = vmatprep.subr.mxu0 0.0
    %37 = vmatpush1.xpose.msra.mxu0 0.0
    %38 = vmatprep.subr.mxu0 0.0
    %39 = vmatpush1.xpose.msra.mxu0 0.0
    %40 = vmatprep.subr.mxu0 0.0
    %41 = vmatpush1.xpose.msra.mxu0 0.0
    %42 = vmatprep.subr.mxu0 0.0
    %43 = vmatpush1.xpose.msra.mxu0 0.0
    %44 = vmatprep.subr.mxu0 0.0
    %45 = vmatpush1.xpose.msra.mxu0 0.0
    %46 = vmatprep.subr.mxu0 0.0
    %47 = vmatpush1.xpose.msra.mxu0 0.0
    %48 = vmatprep.subr.mxu0 0.0
    %49 = vmatpush1.xpose.msra.mxu0 0.0
    %50 = vmatprep.subr.mxu0 0.0
    %51 = vmatpush1.xpose.msra.mxu0 0.0
    %52 = vmatprep.subr.mxu0 0.0
    %53 = vmatpush1.xpose.msra.mxu0 0.0
    %54 = vmatprep.subr.mxu0 0.0
    %55 = vmatpush1.xpose.msra.mxu0 0.0
    %56 = vmatprep.subr.mxu0 0.0
    %57 = vmatpush1.xpose.msra.mxu0 0.0
    %58 = vmatprep.subr.mxu0 0.0
    %59 = vmatpush1.xpose.msra.mxu0 0.0
    %60 = vmatprep.subr.mxu0 %v28
    %61 = vmatpush1.xpose.msra.mxu0 %v27
    %62 = vmatprep.subr.mxu0 0.0
    %63 = vmatpush2.xpose.msra.mxu0 0.0
    %64 = vmatprep.subr.mxu0 0.0
    %65 = vmatpush2.xpose.msra.mxu0 0.0
    %66 = vmatprep.subr.mxu0 0.0
    %67 = vmatpush2.xpose.msra.mxu0 0.0
    %68 = vmatprep.subr.mxu0 0.0
    %69 = vmatpush2.xpose.msra.mxu0 0.0
    %70 = vmatprep.subr.mxu0 0.0
    %71 = vmatpush2.xpose.msra.mxu0 0.0
    %72 = vmatprep.subr.mxu0 0.0
    %73 = vmatpush2.xpose.msra.mxu0 0.0
    %74 = vmatprep.subr.mxu0 0.0
    %75 = vmatpush2.xpose.msra.mxu0 0.0
    %76 = vmatprep.subr.mxu0 0.0
    %77 = vmatpush2.xpose.msra.mxu0 0.0
    %78 = vmatprep.subr.mxu0 0.0
    %79 = vmatpush2.xpose.msra.mxu0 0.0
    %80 = vmatprep.subr.mxu0 0.0
    %81 = vmatpush2.xpose.msra.mxu0 0.0
    %82 = vmatprep.subr.mxu0 0.0
    %83 = vmatpush2.xpose.msra.mxu0 0.0
    %84 = vmatprep.subr.mxu0 0.0
    %85 = vmatpush2.xpose.msra.mxu0 0.0
    %86 = vmatprep.subr.mxu0 0.0
    %87 = vmatpush2.xpose.msra.mxu0 0.0
    %88 = vmatprep.subr.mxu0 0.0
    %89 = vmatpush2.xpose.msra.mxu0 0.0
    %90 = vmatprep.subr.mxu0 0.0
    %91 = vmatpush2.xpose.msra.mxu0 0.0
    %92 = vmatprep.subr.mxu0 0.0
    %93 = vmatpush2.xpose.msra.mxu0 0.0
    %94 = vmatprep.mubr.f32.mxu0 %v28
    %95 = vmatmul.mubr.f32.gmra.mxu0 %v27
    %v96 = vpop.f32.mrf.mxu0
    %v97 = vadd.f32 0.0, %v96
    %v98 = vpop.f32.mrf.mxu0
    %99 = vdwg.mxu0
    %v100 = vadd.f32 %v29, %v97
    %vm101 = vcmask 64512
    %102 = vst.msk [vmem:[#allocation5] sm:$0xff] %vm101, %v100
    // Predicated region
    $region14: #{tpu_custom_call.1} parent=1 // pred_check
      %p103 = pneg %p21
    $region15: #{tpu_custom_call.1} parent=1 // pred_check_branch
      %105 = sbr.rel (%p103) target = $region17
    $region16: #{tpu_custom_call.1} parent=1 // pred_region
      %v106 = vld [vmem:[#allocation5] sm:$0xff]
      %v107 = vmul.f32 %v106, 0.00048828125
      %108 = vst.msk [vmem:[#allocation5] sm:$0xff] %vm101, %v107
    $region17: #{tpu_custom_call.1} parent=1 // pred_fallthru
      _
    // Predicated region
    $region18: #{tpu_custom_call.1} parent=1 // pred_check
      _
    $region19: #{tpu_custom_call.1} parent=1 // pred_check_branch
      %110 = sbr.rel (0) target = $region21
    $region20: #{tpu_custom_call.1} parent=1 // pred_region
      %s112 = ssub.s32 128, 128
      %113 = vsyncadd [#allocation4], %s112
      %s115 = sshll.u32 [#allocation5], 4
      %s116 = int_to_ptr.vmem [resolvable:$true] %s115
      %118 = dma.vmem_to_hbm [thread:$0]  %s116, 128, %s1, [#allocation4]
    $region21: #{tpu_custom_call.1} parent=1 // pred_fallthru
      _
    // Predicated region
    $region22: #{tpu_custom_call.1} parent=1 // pred_check
      _
    $region23: #{tpu_custom_call.1} parent=1 // pred_check_branch
      %120 = sbr.rel (0) target = $region25
    $region24: #{tpu_custom_call.1} parent=1 // pred_region
      %121 = dma.done [#allocation4], 128
    $region25: #{tpu_custom_call.1} parent=1 // pred_fallthru
      _
    %122 = vsyncpa [#allocation3], 1
    %123 = vsyncpa [#allocation4], 1

</llo_original>
